<compile_context>
chip_gen: v7x
topology: tpu7x:2x2x1
jax: 0.10.0
libtpu: 0.0.40
codegen_flags: <defaults>
</compile_context>

<pallas_src>
import functools

import jax
import jax.numpy as jnp
from jax.experimental import pallas as pl
from jax.experimental.pallas import tpu as pltpu


def _round_up(n, m):
    return ((n + m - 1) // m) * m


def _leaky_relu(x, slope=0.2):
    return jnp.where(x > 0, x, slope * x)


def discriminator_kernel(xt_ref,
                         w1_ref, b1_ref,
                         w2_ref, b2_ref,
                         w3_ref, b3_ref,
                         w4_ref, b4_ref,
                         o_ref):
    # xt_ref: (dim, TILE) bf16 — batch on lanes.
    # w1: (64, dim) bf16   b1: (64, 1) f32
    # w2: (256, 64) bf16   b2: (256, 1) f32
    # w3: (64, 256) bf16   b3: (64, 1) f32
    # w4: (64, 1)  f32     b4: (1, 1)  f32
    x = xt_ref[...]                                                   # bf16

    h = jnp.dot(w1_ref[...], x, preferred_element_type=jnp.float32)
    h = _leaky_relu(h + b1_ref[...])                                  # f32 (64, T)

    h = jnp.dot(w2_ref[...], h.astype(jnp.bfloat16),
                preferred_element_type=jnp.float32)
    h = _leaky_relu(h + b2_ref[...])                                  # f32 (256, T)

    h = jnp.dot(w3_ref[...], h.astype(jnp.bfloat16),
                preferred_element_type=jnp.float32)
    h = _leaky_relu(h + b3_ref[...])                                  # f32 (64, T)

    # Final layer has out_features = 1: skip the MXU, do a VPU multiply with a
    # sublane reduction -> already lane-dense (1, TILE).
    y = jnp.sum(h * w4_ref[...], axis=0, keepdims=True) + b4_ref[...]

    # Sigmoid via EUP exp + approximate reciprocal (EUP slot, ~free here).
    s = pl.reciprocal(1.0 + jnp.exp(-y), approx=True)
    o_ref[...] = s.astype(o_ref.dtype)


def discriminator_forward(x, params, *, tile_m=512):
    """x: [B, dim] float32. Returns [B, 1] float32 (matches PyTorch forward)."""
    B, dim = x.shape

    # Tiny batches: single grid step (pure latency-bound); big batches: 512-row
    # tiles, pipelined, one value that fits v5e/v6e/v7x VMEM comfortably.
    if B <= tile_m:
        tile = _round_up(max(B, 1), 128)
    else:
        tile = tile_m
    b_pad = _round_up(B, tile)
    grid = (b_pad // tile,)

    # Lane-dense input slab: pad batch, transpose so batch is on lanes, bf16.
    x_pad = jnp.pad(x, ((0, b_pad - B), (0, 0)))
    xt = x_pad.T.astype(jnp.bfloat16)                      # (dim, b_pad)

    w1 = params["w1"].astype(jnp.bfloat16)
    w2 = params["w2"].astype(jnp.bfloat16)
    w3 = params["w3"].astype(jnp.bfloat16)
    b1, b2, b3 = params["b1"], params["b2"], params["b3"]
    w4, b4 = params["w4"], params["b4"]                    # kept f32 (VPU path)

    weights = (w1, b1, w2, b2, w3, b3, w4, b4)

    in_specs = [pl.BlockSpec((dim, tile), lambda i: (0, i))]
    # Weights/biases: full-array blocks with a constant index_map -> loaded once
    # and kept VMEM-resident across all grid steps (no re-DMA per tile).
    for arr in weights:
        in_specs.append(pl.BlockSpec(arr.shape, lambda i: (0, 0)))

    out = pl.pallas_call(
        discriminator_kernel,
        out_shape=jax.ShapeDtypeStruct((1, b_pad), jnp.float32),
        grid=grid,
        in_specs=in_specs,
        out_specs=pl.BlockSpec((1, tile), lambda i: (0, i)),
        compiler_params=pltpu.CompilerParams(
            # Batch axis is embarrassingly parallel -> megacore sharding on v7x.
            dimension_semantics=("parallel",)),
    )(xt, *weights)

    return out[0, :B].reshape(B, 1)


def init_params(key, dim):
    """PyTorch-style nn.Linear init (U[-1/sqrt(fan_in), +]) in [out, in] layout."""
    sizes = [(dim, 64), (64, 256), (256, 64), (64, 1)]
    params = {}
    for i, (fan_in, fan_out) in enumerate(sizes, start=1):
        key, kw, kb = jax.random.split(key, 3)
        bound = 1.0 / jnp.sqrt(float(fan_in))
        if i < 4:
            w_shape = (fan_out, fan_in)   # [out, in] — matches nn.Linear.weight
            b_shape = (fan_out, 1)
        else:
            w_shape = (fan_in, 1)         # final layer kept as a column vector
            b_shape = (1, 1)
        params[f"w{i}"] = jax.random.uniform(
            kw, w_shape, jnp.float32, minval=-bound, maxval=bound)
        params[f"b{i}"] = jax.random.uniform(
            kb, b_shape, jnp.float32, minval=-bound, maxval=bound)
    return params


@functools.partial(jax.jit)
def reference_forward(x, params):
    """Pure-JAX reference mirroring the kernel numerics (bf16 matmul inputs,
    f32 accumulation / elementwise), operating on x: [B, dim]."""
    h = x
    for i in (1, 2, 3):
        a = h.astype(jnp.bfloat16)
        w = params[f"w{i}"].astype(jnp.bfloat16)
        h = jnp.dot(a, w.T, preferred_element_type=jnp.float32)
        h = h + params[f"b{i}"].T
        h = jnp.where(h > 0, h, 0.2 * h)
    y = h @ params["w4"] + params["b4"].T
    return jax.nn.sigmoid(y)


if __name__ == "__main__":
    key = jax.random.PRNGKey(0)
    dim = 8        # input feature dimension (nn.Linear(dim, 64))
    batch = 8

    key, kx = jax.random.split(key)
    x = jax.random.normal(kx, (batch, dim), jnp.float32)
    params = init_params(key, dim)

    # Small-batch path (single grid step).
    out = jax.block_until_ready(discriminator_forward(x, params))
    ref = reference_forward(x, params)
    assert out.shape == (batch, 1)
    assert jnp.allclose(out, ref, atol=2e-3, rtol=2e-3), (
        f"max abs err {jnp.max(jnp.abs(out - ref))}")

    # Larger batch exercising the tiled, multi-step pipelined grid path.
    key, kx2 = jax.random.split(key)
    x_big = jax.random.normal(kx2, (1536, dim), jnp.float32)
    out_big = jax.block_until_ready(discriminator_forward(x_big, params))
    ref_big = reference_forward(x_big, params)
    assert out_big.shape == (1536, 1)
    assert jnp.allclose(out_big, ref_big, atol=2e-3, rtol=2e-3), (
        f"max abs err {jnp.max(jnp.abs(out_big - ref_big))}")

    print("KERNEL_OK")
</pallas_src>

<mosaic_0001>
module attributes {stable_mosaic.version = 11 : i64} {
  func.func @discriminator_kernel(%arg0: i32, %arg1: memref<8x128xbf16, #tpu.memory_space<vmem>>, %arg2: memref<64x8xbf16, #tpu.memory_space<vmem>>, %arg3: memref<64x1xf32, #tpu.memory_space<vmem>>, %arg4: memref<256x64xbf16, #tpu.memory_space<vmem>>, %arg5: memref<256x1xf32, #tpu.memory_space<vmem>>, %arg6: memref<64x256xbf16, #tpu.memory_space<vmem>>, %arg7: memref<64x1xf32, #tpu.memory_space<vmem>>, %arg8: memref<64x1xf32, #tpu.memory_space<vmem>>, %arg9: memref<1x1xf32, #tpu.memory_space<vmem>>, %arg10: memref<1x128xf32, #tpu.memory_space<vmem>>) attributes {dimension_semantics = [#tpu.dimension_semantics<parallel>], iteration_bounds = array<i64: 1>, scalar_prefetch = 0 : i64, scratch_operands = 0 : i64, tpu.core_type = #tpu.core_type<tc>, window_params = [{transform_indices = @transform_0, window_bounds = array<i64: 8, 128>}, {pipeline_mode = #tpu.pipeline_mode<synchronous>, transform_indices = @transform_1, window_bounds = array<i64: 64, 8>}, {pipeline_mode = #tpu.pipeline_mode<synchronous>, transform_indices = @transform_2, window_bounds = array<i64: 64, 1>}, {pipeline_mode = #tpu.pipeline_mode<synchronous>, transform_indices = @transform_3, window_bounds = array<i64: 256, 64>}, {pipeline_mode = #tpu.pipeline_mode<synchronous>, transform_indices = @transform_4, window_bounds = array<i64: 256, 1>}, {pipeline_mode = #tpu.pipeline_mode<synchronous>, transform_indices = @transform_5, window_bounds = array<i64: 64, 256>}, {pipeline_mode = #tpu.pipeline_mode<synchronous>, transform_indices = @transform_6, window_bounds = array<i64: 64, 1>}, {pipeline_mode = #tpu.pipeline_mode<synchronous>, transform_indices = @transform_7, window_bounds = array<i64: 64, 1>}, {pipeline_mode = #tpu.pipeline_mode<synchronous>, transform_indices = @transform_8, window_bounds = array<i64: 1, 1>}, {transform_indices = @transform_9, window_bounds = array<i64: 1, 128>}]} {
    %c0 = arith.constant 0 : index
    %c0_0 = arith.constant 0 : index
    %0 = vector.load %arg1[%c0, %c0_0] : memref<8x128xbf16, #tpu.memory_space<vmem>>, vector<8x128xbf16>
    %c0_1 = arith.constant 0 : index
    %c0_2 = arith.constant 0 : index
    %1 = vector.load %arg2[%c0_1, %c0_2] : memref<64x8xbf16, #tpu.memory_space<vmem>>, vector<64x8xbf16>
    %cst = arith.constant dense<0.000000e+00> : vector<64x128xf32>
    %2 = tpu.matmul %1, %0, %cst {dimension_numbers = #tpu.dot_dimension_numbers<[1], [0], [0], [1], [0, 0, 1, 1], [], []>} : vector<64x8xbf16>, vector<8x128xbf16>, vector<64x128xf32> -> vector<64x128xf32>
    %c0_3 = arith.constant 0 : index
    %c0_4 = arith.constant 0 : index
    %3 = vector.load %arg3[%c0_3, %c0_4] : memref<64x1xf32, #tpu.memory_space<vmem>>, vector<64x1xf32>
    %4 = vector.broadcast %3 : vector<64x1xf32> to vector<64x128xf32>
    %5 = arith.addf %2, %4 : vector<64x128xf32>
    %cst_5 = arith.constant 0.000000e+00 : f32
    %6 = vector.broadcast %cst_5 : f32 to vector<64x128xf32>
    %7 = arith.cmpf ogt, %5, %6 : vector<64x128xf32>
    %cst_6 = arith.constant 2.000000e-01 : f32
    %8 = vector.broadcast %cst_6 : f32 to vector<64x128xf32>
    %9 = arith.mulf %8, %5 : vector<64x128xf32>
    %10 = arith.select %7, %5, %9 : vector<64x128xi1>, vector<64x128xf32>
    %c0_7 = arith.constant 0 : index
    %c0_8 = arith.constant 0 : index
    %11 = vector.load %arg4[%c0_7, %c0_8] : memref<256x64xbf16, #tpu.memory_space<vmem>>, vector<256x64xbf16>
    %12 = arith.truncf %10 : vector<64x128xf32> to vector<64x128xbf16>
    %cst_9 = arith.constant dense<0.000000e+00> : vector<256x128xf32>
    %13 = tpu.matmul %11, %12, %cst_9 {dimension_numbers = #tpu.dot_dimension_numbers<[1], [0], [0], [1], [0, 0, 1, 1], [], []>} : vector<256x64xbf16>, vector<64x128xbf16>, vector<256x128xf32> -> vector<256x128xf32>
    %c0_10 = arith.constant 0 : index
    %c0_11 = arith.constant 0 : index
    %14 = vector.load %arg5[%c0_10, %c0_11] : memref<256x1xf32, #tpu.memory_space<vmem>>, vector<256x1xf32>
    %15 = vector.broadcast %14 : vector<256x1xf32> to vector<256x128xf32>
    %16 = arith.addf %13, %15 : vector<256x128xf32>
    %cst_12 = arith.constant 0.000000e+00 : f32
    %17 = vector.broadcast %cst_12 : f32 to vector<256x128xf32>
    %18 = arith.cmpf ogt, %16, %17 : vector<256x128xf32>
    %cst_13 = arith.constant 2.000000e-01 : f32
    %19 = vector.broadcast %cst_13 : f32 to vector<256x128xf32>
    %20 = arith.mulf %19, %16 : vector<256x128xf32>
    %21 = arith.select %18, %16, %20 : vector<256x128xi1>, vector<256x128xf32>
    %c0_14 = arith.constant 0 : index
    %c0_15 = arith.constant 0 : index
    %22 = vector.load %arg6[%c0_14, %c0_15] : memref<64x256xbf16, #tpu.memory_space<vmem>>, vector<64x256xbf16>
    %23 = arith.truncf %21 : vector<256x128xf32> to vector<256x128xbf16>
    %cst_16 = arith.constant dense<0.000000e+00> : vector<64x128xf32>
    %24 = tpu.matmul %22, %23, %cst_16 {dimension_numbers = #tpu.dot_dimension_numbers<[1], [0], [0], [1], [0, 0, 1, 1], [], []>} : vector<64x256xbf16>, vector<256x128xbf16>, vector<64x128xf32> -> vector<64x128xf32>
    %c0_17 = arith.constant 0 : index
    %c0_18 = arith.constant 0 : index
    %25 = vector.load %arg7[%c0_17, %c0_18] : memref<64x1xf32, #tpu.memory_space<vmem>>, vector<64x1xf32>
    %26 = vector.broadcast %25 : vector<64x1xf32> to vector<64x128xf32>
    %27 = arith.addf %24, %26 : vector<64x128xf32>
    %cst_19 = arith.constant 0.000000e+00 : f32
    %28 = vector.broadcast %cst_19 : f32 to vector<64x128xf32>
    %29 = arith.cmpf ogt, %27, %28 : vector<64x128xf32>
    %cst_20 = arith.constant 2.000000e-01 : f32
    %30 = vector.broadcast %cst_20 : f32 to vector<64x128xf32>
    %31 = arith.mulf %30, %27 : vector<64x128xf32>
    %32 = arith.select %29, %27, %31 : vector<64x128xi1>, vector<64x128xf32>
    %c0_21 = arith.constant 0 : index
    %c0_22 = arith.constant 0 : index
    %33 = vector.load %arg8[%c0_21, %c0_22] : memref<64x1xf32, #tpu.memory_space<vmem>>, vector<64x1xf32>
    %34 = vector.broadcast %33 : vector<64x1xf32> to vector<64x128xf32>
    %35 = arith.mulf %32, %34 : vector<64x128xf32>
    %cst_23 = arith.constant dense<0.000000e+00> : vector<128xf32>
    %36 = vector.multi_reduction <add>, %35, %cst_23 [0] : vector<64x128xf32> to vector<128xf32>
    %37 = vector.shape_cast %36 : vector<128xf32> to vector<1x128xf32>
    %c0_24 = arith.constant 0 : index
    %c0_25 = arith.constant 0 : index
    %38 = vector.load %arg9[%c0_24, %c0_25] : memref<1x1xf32, #tpu.memory_space<vmem>>, vector<1x1xf32>
    %39 = vector.broadcast %38 : vector<1x1xf32> to vector<1x128xf32>
    %40 = arith.addf %37, %39 : vector<1x128xf32>
    %cst_26 = arith.constant 0.000000e+00 : f32
    %41 = vector.broadcast %cst_26 : f32 to vector<1x128xf32>
    %42 = arith.subf %41, %40 : vector<1x128xf32>
    %43 = math.exp %42 : vector<1x128xf32>
    %cst_27 = arith.constant 1.000000e+00 : f32
    %44 = vector.broadcast %cst_27 : f32 to vector<1x128xf32>
    %45 = arith.addf %44, %43 : vector<1x128xf32>
    %46 = tpu.reciprocal %45 {approx = true} : vector<1x128xf32> -> vector<1x128xf32>
    %c0_28 = arith.constant 0 : index
    %c0_29 = arith.constant 0 : index
    %47 = vector.load %arg10[%c0_28, %c0_29] : memref<1x128xf32, #tpu.memory_space<vmem>>, vector<1x128xf32>
    tpu.vector_store %arg10[%c0_28, %c0_29], %46 {strides = array<i32>} : memref<1x128xf32, #tpu.memory_space<vmem>>, vector<1x128xf32>,
    return
  }
  func.func @transform_0(%arg0: i32) -> (i32, i32) {
    %c0_i32 = arith.constant 0 : i32
    %c0_i32_0 = arith.constant 0 : i32
    return %c0_i32, %arg0 : i32, i32
  }
  func.func @transform_1(%arg0: i32) -> (i32, i32) {
    %c0_i32 = arith.constant 0 : i32
    %c0_i32_0 = arith.constant 0 : i32
    %c0_i32_1 = arith.constant 0 : i32
    return %c0_i32, %c0_i32_0 : i32, i32
  }
  func.func @transform_2(%arg0: i32) -> (i32, i32) {
    %c0_i32 = arith.constant 0 : i32
    %c0_i32_0 = arith.constant 0 : i32
    %c0_i32_1 = arith.constant 0 : i32
    return %c0_i32, %c0_i32_0 : i32, i32
  }
  func.func @transform_3(%arg0: i32) -> (i32, i32) {
    %c0_i32 = arith.constant 0 : i32
    %c0_i32_0 = arith.constant 0 : i32
    %c0_i32_1 = arith.constant 0 : i32
    return %c0_i32, %c0_i32_0 : i32, i32
  }
  func.func @transform_4(%arg0: i32) -> (i32, i32) {
    %c0_i32 = arith.constant 0 : i32
    %c0_i32_0 = arith.constant 0 : i32
    %c0_i32_1 = arith.constant 0 : i32
    return %c0_i32, %c0_i32_0 : i32, i32
  }
  func.func @transform_5(%arg0: i32) -> (i32, i32) {
    %c0_i32 = arith.constant 0 : i32
    %c0_i32_0 = arith.constant 0 : i32
    %c0_i32_1 = arith.constant 0 : i32
    return %c0_i32, %c0_i32_0 : i32, i32
  }
  func.func @transform_6(%arg0: i32) -> (i32, i32) {
    %c0_i32 = arith.constant 0 : i32
    %c0_i32_0 = arith.constant 0 : i32
    %c0_i32_1 = arith.constant 0 : i32
    return %c0_i32, %c0_i32_0 : i32, i32
  }
  func.func @transform_7(%arg0: i32) -> (i32, i32) {
    %c0_i32 = arith.constant 0 : i32
    %c0_i32_0 = arith.constant 0 : i32
    %c0_i32_1 = arith.constant 0 : i32
    return %c0_i32, %c0_i32_0 : i32, i32
  }
  func.func @transform_8(%arg0: i32) -> (i32, i32) {
    %c0_i32 = arith.constant 0 : i32
    %c0_i32_0 = arith.constant 0 : i32
    %c0_i32_1 = arith.constant 0 : i32
    return %c0_i32, %c0_i32_0 : i32, i32
  }
  func.func @transform_9(%arg0: i32) -> (i32, i32) {
    %c0_i32 = arith.constant 0 : i32
    %c0_i32_0 = arith.constant 0 : i32
    return %c0_i32, %arg0 : i32, i32
  }
}

</mosaic_0001>

<llo_original>
// kernel: tpu_custom_call.1
$region0: #{tpu_custom_call.1}
  #allocation0 [shape = 'u32[]', space=smem, size = 0x4, offset = 0x4, fixed_abs, tag = 'smem constant byte address 0x4 - core index']
  #allocation1 [shape = 'u32[144,128]{1,0:T(1,128)}', space=vmem, size = 0x12000, scoped, tag = 'internal scratch']
  #allocation2 [shape = 'f32[1,1]{1,0:T(1,128)S(1)}', space=vmem, size = 0x200, scoped, tag = 'scoped memory for tpu_custom_call.1']
  %s0 = inlined_call_operand.vmem [shape: bf16[8,128], index: 0, kind: input, shape index: {}]
  %s1 = inlined_call_operand.vmem [shape: bf16[64,8], index: 1, kind: input, shape index: {}]
  %s2 = inlined_call_operand.vmem [shape: f32[64,1], index: 2, kind: input, shape index: {}]
  %s3 = inlined_call_operand.vmem [shape: bf16[256,64], index: 3, kind: input, shape index: {}]
  %s4 = inlined_call_operand.vmem [shape: f32[256,1], index: 4, kind: input, shape index: {}]
  %s5 = inlined_call_operand.vmem [shape: bf16[64,256], index: 5, kind: input, shape index: {}]
  %s6 = inlined_call_operand.vmem [shape: f32[64,1], index: 6, kind: input, shape index: {}]
  %s7 = inlined_call_operand.vmem [shape: f32[64,1], index: 7, kind: input, shape index: {}]
  %s8 = inlined_call_operand.<no memory space> [shape: f32[1,1], index: 8, kind: input, shape index: {}]
  %s9 = inlined_call_operand.hbm [shape: f32[1,128], index: 9, kind: output, shape index: {}]
  %s10 = sld [smem:[#allocation0]]
  $region46: #{tpu_custom_call.1} parent=0
    _
  %s12 = ssub.s32 1, %s10
  %s13 = scalar_select 0, %s12, %s10
  %v14 = vstv %s8
  %15 = vst [vmem:[#allocation2] sm:$0x1] %v14
  $region1: #{tpu_custom_call.1} parent=0
    #allocation3 [shape = 'u8[512]{0}', space=vmem, size = 0x400, scoped, tag = 'output window, operand 0, single buffered']
    #allocation4 [shape = 's32[1]{0}', space=sflag, size = 0x4, scoped, tag = 'scoped memory for tpu_custom_call.1']
    %16 = vsyncpa [#allocation4], 0
    // Predicated region
    $region2: #{tpu_custom_call.1} parent=1 // pred_check
      _
    $region3: #{tpu_custom_call.1} parent=1 // pred_check_branch
      %18 = sbr.rel (0) target = $region5
    $region4: #{tpu_custom_call.1} parent=1 // pred_region
      _
    $region5: #{tpu_custom_call.1} parent=1 // pred_fallthru
      _
    // Predicated region
    $region6: #{tpu_custom_call.1} parent=1 // pred_check
      _
    $region7: #{tpu_custom_call.1} parent=1 // pred_check_branch
      %20 = sbr.rel (0) target = $region9
    $region8: #{tpu_custom_call.1} parent=1 // pred_region
      _
    $region9: #{tpu_custom_call.1} parent=1 // pred_fallthru
      _
    // Predicated region
    $region10: #{tpu_custom_call.1} parent=1 // pred_check
      _
    $region11: #{tpu_custom_call.1} parent=1 // pred_check_branch
      %22 = sbr.rel (0) target = $region13
    $region12: #{tpu_custom_call.1} parent=1 // pred_region
      _
    $region13: #{tpu_custom_call.1} parent=1 // pred_fallthru
      _
    // Predicated region
    $region14: #{tpu_custom_call.1} parent=1 // pred_check
      _
    $region15: #{tpu_custom_call.1} parent=1 // pred_check_branch
      %24 = sbr.rel (0) target = $region17
    $region16: #{tpu_custom_call.1} parent=1 // pred_region
      _
    $region17: #{tpu_custom_call.1} parent=1 // pred_fallthru
      _
    // Predicated region
    $region18: #{tpu_custom_call.1} parent=1 // pred_check
      _
    $region19: #{tpu_custom_call.1} parent=1 // pred_check_branch
      %26 = sbr.rel (0) target = $region21
    $region20: #{tpu_custom_call.1} parent=1 // pred_region
      _
    $region21: #{tpu_custom_call.1} parent=1 // pred_fallthru
      _
    // Predicated region
    $region22: #{tpu_custom_call.1} parent=1 // pred_check
      _
    $region23: #{tpu_custom_call.1} parent=1 // pred_check_branch
      %28 = sbr.rel (0) target = $region25
    $region24: #{tpu_custom_call.1} parent=1 // pred_region
      _
    $region25: #{tpu_custom_call.1} parent=1 // pred_fallthru
      _
    // Predicated region
    $region26: #{tpu_custom_call.1} parent=1 // pred_check
      _
    $region27: #{tpu_custom_call.1} parent=1 // pred_check_branch
      %30 = sbr.rel (0) target = $region29
    $region28: #{tpu_custom_call.1} parent=1 // pred_region
      _
    $region29: #{tpu_custom_call.1} parent=1 // pred_fallthru
      _
    // Predicated region
    $region30: #{tpu_custom_call.1} parent=1 // pred_check
      _
    $region31: #{tpu_custom_call.1} parent=1 // pred_check_branch
      %32 = sbr.rel (0) target = $region33
    $region32: #{tpu_custom_call.1} parent=1 // pred_region
      _
    $region33: #{tpu_custom_call.1} parent=1 // pred_fallthru
      _
    // Predicated region
    $region34: #{tpu_custom_call.1} parent=1 // pred_check
      _
    $region35: #{tpu_custom_call.1} parent=1 // pred_check_branch
      %34 = sbr.rel (0) target = $region37
    $region36: #{tpu_custom_call.1} parent=1 // pred_region
      _
    $region37: #{tpu_custom_call.1} parent=1 // pred_fallthru
      _
    %v36 = vld [vmem:[%s0] sm:$0xf]
    %v37 = vld [vmem:[%s1] sm:$0xf]
    %v38 = vld [vmem:[%s1 + $0x4] sm:$0xf]
    %v39 = vld [vmem:[%s1 + $0x8] sm:$0xf]
    %v40 = vld [vmem:[%s1 + $0xc] sm:$0xf]
    %v41 = vld [vmem:[%s1 + $0x10] sm:$0xf]
    %v42 = vld [vmem:[%s1 + $0x14] sm:$0xf]
    %v43 = vld [vmem:[%s1 + $0x18] sm:$0xf]
    %v44 = vld [vmem:[%s1 + $0x1c] sm:$0xf]
    %v45 = vld [vmem:[%s2] sm:$0xff]
    %v46 = vld [vmem:[%s2 + $0x8] sm:$0xff]
    %v47 = vld [vmem:[%s2 + $0x10] sm:$0xff]
    %v48 = vld [vmem:[%s2 + $0x18] sm:$0xff]
    %v49 = vld [vmem:[%s2 + $0x20] sm:$0xff]
    %v50 = vld [vmem:[%s2 + $0x28] sm:$0xff]
    %v51 = vld [vmem:[%s2 + $0x30] sm:$0xff]
    %v52 = vld [vmem:[%s2 + $0x38] sm:$0xff]
    %54 = vset.pattern.permute.xlu0 0
    %55 = vperm.xlu0 %54, %v45
    %v56 = vpop.permute.xlu0 %55
    %59 = vset.pattern.permute.xlu0 0
    %60 = vperm.xlu0 %59, %v46
    %v61 = vpop.permute.xlu0 %60
    %64 = vset.pattern.permute.xlu0 0
    %65 = vperm.xlu0 %64, %v47
    %v66 = vpop.permute.xlu0 %65
    %69 = vset.pattern.permute.xlu0 0
    %70 = vperm.xlu0 %69, %v48
    %v71 = vpop.permute.xlu0 %70
    %74 = vset.pattern.permute.xlu0 0
    %75 = vperm.xlu0 %74, %v49
    %v76 = vpop.permute.xlu0 %75
    %79 = vset.pattern.permute.xlu0 0
    %80 = vperm.xlu0 %79, %v50
    %v81 = vpop.permute.xlu0 %80
    %84 = vset.pattern.permute.xlu0 0
    %85 = vperm.xlu0 %84, %v51
    %v86 = vpop.permute.xlu0 %85
    %89 = vset.pattern.permute.xlu0 0
    %90 = vperm.xlu0 %89, %v52
    %v91 = vpop.permute.xlu0 %90
    %v101 = vunpack.c.l.b16 %v37
    %v102 = vunpack.c.l.b16 %v38
    %v103 = vunpack.c.l.b16 %v39
    %v104 = vunpack.c.l.b16 %v40
    %v105 = vunpack.c.l.b16 %v41
    %v106 = vunpack.c.l.b16 %v42
    %v107 = vunpack.c.l.b16 %v43
    %v108 = vunpack.c.l.b16 %v44
    %v109 = vpack.c.b16 %v102, %v101
    %v110 = vpack.c.b16 %v104, %v103
    %v111 = vpack.c.b16 %v106, %v105
    %v112 = vpack.c.b16 %v108, %v107
    %vm113 = vcmask 64512
    %v115 = vsel %vm113, %v109, 0
    %v118 = vsel %vm113, %v110, 0
    %v121 = vsel %vm113, %v111, 0
    %v124 = vsel %vm113, %v112, 0
    %vm126 = vcmask 1043456
    %v128 = vsel %vm126, %v36, 0
    %130 = vmatprep.subr.bf16.mxu0 0
    %131 = vmatpush1.bf16.msra.mxu0 %v128
    %132 = vmatprep.subr.bf16.mxu0 0
    %133 = vmatpush1.bf16.msra.mxu0 0
    %134 = vmatprep.subr.bf16.mxu0 0
    %135 = vmatpush1.bf16.msra.mxu0 0
    %136 = vmatprep.subr.bf16.mxu0 0
    %137 = vmatpush1.bf16.msra.mxu0 0
    %138 = vmatprep.subr.bf16.mxu0 0
    %139 = vmatpush1.bf16.msra.mxu0 0
    %140 = vmatprep.subr.bf16.mxu0 0
    %141 = vmatpush1.bf16.msra.mxu0 0
    %142 = vmatprep.subr.bf16.mxu0 0
    %143 = vmatpush1.bf16.msra.mxu0 0
    %144 = vmatprep.subr.bf16.mxu0 0
    %145 = vmatpush1.bf16.msra.mxu0 0
    %146 = vmatprep.subr.bf16.mxu0 0
    %147 = vmatpush1.bf16.msra.mxu0 0
    %148 = vmatprep.subr.bf16.mxu0 0
    %149 = vmatpush1.bf16.msra.mxu0 0
    %150 = vmatprep.subr.bf16.mxu0 0
    %151 = vmatpush1.bf16.msra.mxu0 0
    %152 = vmatprep.subr.bf16.mxu0 0
    %153 = vmatpush1.bf16.msra.mxu0 0
    %154 = vmatprep.subr.bf16.mxu0 0
    %155 = vmatpush1.bf16.msra.mxu0 0
    %156 = vmatprep.subr.bf16.mxu0 0
    %157 = vmatpush1.bf16.msra.mxu0 0
    %158 = vmatprep.subr.bf16.mxu0 0
    %159 = vmatpush1.bf16.msra.mxu0 0
    %160 = vmatprep.subr.bf16.mxu0 0
    %161 = vmatpush1.bf16.msra.mxu0 0
    %162 = vmatprep.mubr.bf16.mxu0 0
    %163 = vmatmul.mubr.bf16.gmra.mrb[0].mxu0 %v115
    %v164 = vpop.f32.mrb[0].mxu0
    %v165 = vadd.f32 %v56, %v164
    %v166 = vpop.f32.mrb[0].mxu0
    %v167 = vpop.f32.mrb[0].mxu0
    %v168 = vadd.f32 %v61, %v167
    %v169 = vpop.f32.mrb[0].mxu0
    %170 = vmatprep.mubr.bf16.mxu0 0
    %171 = vmatmul.mubr.bf16.gmra.mrb[0].mxu0 %v118
    %v172 = vpop.f32.mrb[0].mxu0
    %v173 = vadd.f32 %v66, %v172
    %v174 = vpop.f32.mrb[0].mxu0
    %v175 = vpop.f32.mrb[0].mxu0
    %v176 = vadd.f32 %v71, %v175
    %v177 = vpop.f32.mrb[0].mxu0
    %178 = vmatprep.mubr.bf16.mxu0 0
    %179 = vmatmul.mubr.bf16.gmra.mrb[0].mxu0 %v121
    %v180 = vpop.f32.mrb[0].mxu0
    %v181 = vadd.f32 %v76, %v180
    %v182 = vpop.f32.mrb[0].mxu0
    %v183 = vpop.f32.mrb[0].mxu0
    %v184 = vadd.f32 %v81, %v183
    %v185 = vpop.f32.mrb[0].mxu0
    %186 = vmatprep.mubr.bf16.mxu0 0
    %187 = vmatmul.mubr.bf16.gmra.mrb[0].mxu0 %v124
    %v188 = vpop.f32.mrb[0].mxu0
    %v189 = vadd.f32 %v86, %v188
    %v190 = vpop.f32.mrb[0].mxu0
    %v191 = vpop.f32.mrb[0].mxu0
    %v192 = vadd.f32 %v91, %v191
    %v193 = vpop.f32.mrb[0].mxu0
    %194 = vdwg.mxu0
    %vm195 = vcmp.gt.f32.partialorder %v165, 0.0
    %vm196 = vcmp.gt.f32.partialorder %v168, 0.0
    %vm197 = vcmp.gt.f32.partialorder %v173, 0.0
    %vm198 = vcmp.gt.f32.partialorder %v176, 0.0
    %vm199 = vcmp.gt.f32.partialorder %v181, 0.0
    %vm200 = vcmp.gt.f32.partialorder %v184, 0.0
    %vm201 = vcmp.gt.f32.partialorder %v189, 0.0
    %vm202 = vcmp.gt.f32.partialorder %v192, 0.0
    %v203 = vmul.f32 %v165, 0.2
    %v204 = vmul.f32 %v168, 0.2
    %v205 = vmul.f32 %v173, 0.2
    %v206 = vmul.f32 %v176, 0.2
    %v207 = vmul.f32 %v181, 0.2
    %v208 = vmul.f32 %v184, 0.2
    %v209 = vmul.f32 %v189, 0.2
    %v210 = vmul.f32 %v192, 0.2
    %v211 = vsel %vm195, %v165, %v203
    %v212 = vsel %vm196, %v168, %v204
    %v213 = vsel %vm197, %v173, %v205
    %v214 = vsel %vm198, %v176, %v206
    %v215 = vsel %vm199, %v181, %v207
    %v216 = vsel %vm200, %v184, %v208
    %v217 = vsel %vm201, %v189, %v209
    %v218 = vsel %vm202, %v192, %v210
    %v219 = vld [vmem:[%s3] sm:$0xf]
    %v220 = vld [vmem:[%s3 + $0x4] sm:$0xf]
    %v221 = vld [vmem:[%s3 + $0x8] sm:$0xf]
    %v222 = vld [vmem:[%s3 + $0xc] sm:$0xf]
    %v223 = vld [vmem:[%s3 + $0x10] sm:$0xf]
    %v224 = vld [vmem:[%s3 + $0x14] sm:$0xf]
    %v225 = vld [vmem:[%s3 + $0x18] sm:$0xf]
    %v226 = vld [vmem:[%s3 + $0x1c] sm:$0xf]
    %v227 = vld [vmem:[%s3 + $0x20] sm:$0xf]
    %v228 = vld [vmem:[%s3 + $0x24] sm:$0xf]
    %v229 = vld [vmem:[%s3 + $0x28] sm:$0xf]
    %v230 = vld [vmem:[%s3 + $0x2c] sm:$0xf]
    %v231 = vld [vmem:[%s3 + $0x30] sm:$0xf]
    %v232 = vld [vmem:[%s3 + $0x34] sm:$0xf]
    %v233 = vld [vmem:[%s3 + $0x38] sm:$0xf]
    %v234 = vld [vmem:[%s3 + $0x3c] sm:$0xf]
    %v235 = vld [vmem:[%s3 + $0x40] sm:$0xf]
    %v236 = vld [vmem:[%s3 + $0x44] sm:$0xf]
    %v237 = vld [vmem:[%s3 + $0x48] sm:$0xf]
    %v238 = vld [vmem:[%s3 + $0x4c] sm:$0xf]
    %v239 = vld [vmem:[%s3 + $0x50] sm:$0xf]
    %v240 = vld [vmem:[%s3 + $0x54] sm:$0xf]
    %v241 = vld [vmem:[%s3 + $0x58] sm:$0xf]
    %v242 = vld [vmem:[%s3 + $0x5c] sm:$0xf]
    %v243 = vld [vmem:[%s3 + $0x60] sm:$0xf]
    %v244 = vld [vmem:[%s3 + $0x64] sm:$0xf]
    %v245 = vld [vmem:[%s3 + $0x68] sm:$0xf]
    %v246 = vld [vmem:[%s3 + $0x6c] sm:$0xf]
    %v247 = vld [vmem:[%s3 + $0x70] sm:$0xf]
    %v248 = vld [vmem:[%s3 + $0x74] sm:$0xf]
    %v249 = vld [vmem:[%s3 + $0x78] sm:$0xf]
    %v250 = vld [vmem:[%s3 + $0x7c] sm:$0xf]
    %v251 = vpack.c.bf16 %v212, %v211
    %v252 = vpack.c.bf16 %v214, %v213
    %v253 = vpack.c.bf16 %v216, %v215
    %v254 = vpack.c.bf16 %v218, %v217
    %v255 = vld [vmem:[%s4] sm:$0xff]
    %v256 = vld [vmem:[%s4 + $0x8] sm:$0xff]
    %v257 = vld [vmem:[%s4 + $0x10] sm:$0xff]
    %v258 = vld [vmem:[%s4 + $0x18] sm:$0xff]
    %v259 = vld [vmem:[%s4 + $0x20] sm:$0xff]
    %v260 = vld [vmem:[%s4 + $0x28] sm:$0xff]
    %v261 = vld [vmem:[%s4 + $0x30] sm:$0xff]
    %v262 = vld [vmem:[%s4 + $0x38] sm:$0xff]
    %v263 = vld [vmem:[%s4 + $0x40] sm:$0xff]
    %v264 = vld [vmem:[%s4 + $0x48] sm:$0xff]
    %v265 = vld [vmem:[%s4 + $0x50] sm:$0xff]
    %v266 = vld [vmem:[%s4 + $0x58] sm:$0xff]
    %v267 = vld [vmem:[%s4 + $0x60] sm:$0xff]
    %v268 = vld [vmem:[%s4 + $0x68] sm:$0xff]
    %v269 = vld [vmem:[%s4 + $0x70] sm:$0xff]
    %v270 = vld [vmem:[%s4 + $0x78] sm:$0xff]
    %v271 = vld [vmem:[%s4 + $0x80] sm:$0xff]
    %v272 = vld [vmem:[%s4 + $0x88] sm:$0xff]
    %v273 = vld [vmem:[%s4 + $0x90] sm:$0xff]
    %v274 = vld [vmem:[%s4 + $0x98] sm:$0xff]
    %v275 = vld [vmem:[%s4 + $0xa0] sm:$0xff]
    %v276 = vld [vmem:[%s4 + $0xa8] sm:$0xff]
    %v277 = vld [vmem:[%s4 + $0xb0] sm:$0xff]
    %v278 = vld [vmem:[%s4 + $0xb8] sm:$0xff]
    %v279 = vld [vmem:[%s4 + $0xc0] sm:$0xff]
    %v280 = vld [vmem:[%s4 + $0xc8] sm:$0xff]
    %v281 = vld [vmem:[%s4 + $0xd0] sm:$0xff]
    %v282 = vld [vmem:[%s4 + $0xd8] sm:$0xff]
    %v283 = vld [vmem:[%s4 + $0xe0] sm:$0xff]
    %v284 = vld [vmem:[%s4 + $0xe8] sm:$0xff]
    %v285 = vld [vmem:[%s4 + $0xf0] sm:$0xff]
    %v286 = vld [vmem:[%s4 + $0xf8] sm:$0xff]
    %288 = vset.pattern.permute.xlu0 0
    %289 = vperm.xlu0 %288, %v255
    %v290 = vpop.permute.xlu0 %289
    %293 = vset.pattern.permute.xlu0 0
    %294 = vperm.xlu0 %293, %v256
    %v295 = vpop.permute.xlu0 %294
    %298 = vset.pattern.permute.xlu0 0
    %299 = vperm.xlu0 %298, %v257
    %v300 = vpop.permute.xlu0 %299
    %303 = vset.pattern.permute.xlu0 0
    %304 = vperm.xlu0 %303, %v258
    %v305 = vpop.permute.xlu0 %304
    %308 = vset.pattern.permute.xlu0 0
    %309 = vperm.xlu0 %308, %v259
    %v310 = vpop.permute.xlu0 %309
    %313 = vset.pattern.permute.xlu0 0
    %314 = vperm.xlu0 %313, %v260
    %v315 = vpop.permute.xlu0 %314
    %318 = vset.pattern.permute.xlu0 0
    %319 = vperm.xlu0 %318, %v261
    %v320 = vpop.permute.xlu0 %319
    %323 = vset.pattern.permute.xlu0 0
    %324 = vperm.xlu0 %323, %v262
    %v325 = vpop.permute.xlu0 %324
    %328 = vset.pattern.permute.xlu0 0
    %329 = vperm.xlu0 %328, %v263
    %v330 = vpop.permute.xlu0 %329
    %333 = vset.pattern.permute.xlu0 0
    %334 = vperm.xlu0 %333, %v264
    %v335 = vpop.permute.xlu0 %334
    %338 = vset.pattern.permute.xlu0 0
    %339 = vperm.xlu0 %338, %v265
    %v340 = vpop.permute.xlu0 %339
    %343 = vset.pattern.permute.xlu0 0
    %344 = vperm.xlu0 %343, %v266
    %v345 = vpop.permute.xlu0 %344
    %348 = vset.pattern.permute.xlu0 0
    %349 = vperm.xlu0 %348, %v267
    %v350 = vpop.permute.xlu0 %349
    %353 = vset.pattern.permute.xlu0 0
    %354 = vperm.xlu0 %353, %v268
    %v355 = vpop.permute.xlu0 %354
    %358 = vset.pattern.permute.xlu0 0
    %359 = vperm.xlu0 %358, %v269
    %v360 = vpop.permute.xlu0 %359
    %363 = vset.pattern.permute.xlu0 0
    %364 = vperm.xlu0 %363, %v270
    %v365 = vpop.permute.xlu0 %364
    %368 = vset.pattern.permute.xlu0 0
    %369 = vperm.xlu0 %368, %v271
    %v370 = vpop.permute.xlu0 %369
    %373 = vset.pattern.permute.xlu0 0
    %374 = vperm.xlu0 %373, %v272
    %v375 = vpop.permute.xlu0 %374
    %378 = vset.pattern.permute.xlu0 0
    %379 = vperm.xlu0 %378, %v273
    %v380 = vpop.permute.xlu0 %379
    %383 = vset.pattern.permute.xlu0 0
    %384 = vperm.xlu0 %383, %v274
    %v385 = vpop.permute.xlu0 %384
    %388 = vset.pattern.permute.xlu0 0
    %389 = vperm.xlu0 %388, %v275
    %v390 = vpop.permute.xlu0 %389
    %393 = vset.pattern.permute.xlu0 0
    %394 = vperm.xlu0 %393, %v276
    %v395 = vpop.permute.xlu0 %394
    %398 = vset.pattern.permute.xlu0 0
    %399 = vperm.xlu0 %398, %v277
    %v400 = vpop.permute.xlu0 %399
    %403 = vset.pattern.permute.xlu0 0
    %404 = vperm.xlu0 %403, %v278
    %v405 = vpop.permute.xlu0 %404
    %408 = vset.pattern.permute.xlu0 0
    %409 = vperm.xlu0 %408, %v279
    %v410 = vpop.permute.xlu0 %409
    %413 = vset.pattern.permute.xlu0 0
    %414 = vperm.xlu0 %413, %v280
    %v415 = vpop.permute.xlu0 %414
    %418 = vset.pattern.permute.xlu0 0
    %419 = vperm.xlu0 %418, %v281
    %v420 = vpop.permute.xlu0 %419
    %423 = vset.pattern.permute.xlu0 0
    %424 = vperm.xlu0 %423, %v282
    %v425 = vpop.permute.xlu0 %424
    %428 = vset.pattern.permute.xlu0 0
    %429 = vperm.xlu0 %428, %v283
    %v430 = vpop.permute.xlu0 %429
    %433 = vset.pattern.permute.xlu0 0
    %434 = vperm.xlu0 %433, %v284
    %v435 = vpop.permute.xlu0 %434
    %438 = vset.pattern.permute.xlu0 0
    %439 = vperm.xlu0 %438, %v285
    %v440 = vpop.permute.xlu0 %439
    %443 = vset.pattern.permute.xlu0 0
    %444 = vperm.xlu0 %443, %v286
    %v445 = vpop.permute.xlu0 %444
    %v479 = vunpack.c.l.b16 %v219
    %v480 = vunpack.c.l.b16 %v220
    %v481 = vunpack.c.l.b16 %v221
    %v482 = vunpack.c.l.b16 %v222
    %v483 = vunpack.c.l.b16 %v223
    %v484 = vunpack.c.l.b16 %v224
    %v485 = vunpack.c.l.b16 %v225
    %v486 = vunpack.c.l.b16 %v226
    %v487 = vunpack.c.l.b16 %v227
    %v488 = vunpack.c.l.b16 %v228
    %v489 = vunpack.c.l.b16 %v229
    %v490 = vunpack.c.l.b16 %v230
    %v491 = vunpack.c.l.b16 %v231
    %v492 = vunpack.c.l.b16 %v232
    %v493 = vunpack.c.l.b16 %v233
    %v494 = vunpack.c.l.b16 %v234
    %v495 = vunpack.c.l.b16 %v235
    %v496 = vunpack.c.l.b16 %v236
    %v497 = vunpack.c.l.b16 %v237
    %v498 = vunpack.c.l.b16 %v238
    %v499 = vunpack.c.l.b16 %v239
    %v500 = vunpack.c.l.b16 %v240
    %v501 = vunpack.c.l.b16 %v241
    %v502 = vunpack.c.l.b16 %v242
    %v503 = vunpack.c.l.b16 %v243
    %v504 = vunpack.c.l.b16 %v244
    %v505 = vunpack.c.l.b16 %v245
    %v506 = vunpack.c.l.b16 %v246
    %v507 = vunpack.c.l.b16 %v247
    %v508 = vunpack.c.l.b16 %v248
    %v509 = vunpack.c.l.b16 %v249
    %v510 = vunpack.c.l.b16 %v250
    %v511 = vpack.c.b16 %v480, %v479
    %v512 = vpack.c.b16 %v482, %v481
    %v513 = vpack.c.b16 %v484, %v483
    %v514 = vpack.c.b16 %v486, %v485
    %v515 = vpack.c.b16 %v488, %v487
    %v516 = vpack.c.b16 %v490, %v489
    %v517 = vpack.c.b16 %v492, %v491
    %v518 = vpack.c.b16 %v494, %v493
    %v519 = vpack.c.b16 %v496, %v495
    %v520 = vpack.c.b16 %v498, %v497
    %v521 = vpack.c.b16 %v500, %v499
    %v522 = vpack.c.b16 %v502, %v501
    %v523 = vpack.c.b16 %v504, %v503
    %v524 = vpack.c.b16 %v506, %v505
    %v525 = vpack.c.b16 %v508, %v507
    %v526 = vpack.c.b16 %v510, %v509
    %vm527 = vcmask 523264
    %v529 = vsel %vm527, %v511, 0
    %v532 = vsel %vm527, %v512, 0
    %v535 = vsel %vm527, %v513, 0
    %v538 = vsel %vm527, %v514, 0
    %v541 = vsel %vm527, %v515, 0
    %v544 = vsel %vm527, %v516, 0
    %v547 = vsel %vm527, %v517, 0
    %v550 = vsel %vm527, %v518, 0
    %v553 = vsel %vm527, %v519, 0
    %v556 = vsel %vm527, %v520, 0
    %v559 = vsel %vm527, %v521, 0
    %v562 = vsel %vm527, %v522, 0
    %v565 = vsel %vm527, %v523, 0
    %v568 = vsel %vm527, %v524, 0
    %v571 = vsel %vm527, %v525, 0
    %v574 = vsel %vm527, %v526, 0
    %576 = vmatprep.subr.bf16.mxu0 0
    %577 = vmatpush1.bf16.msra.mxu0 %v251
    %578 = vmatprep.subr.bf16.mxu0 0
    %579 = vmatpush1.bf16.msra.mxu0 %v252
    %580 = vmatprep.subr.bf16.mxu0 0
    %581 = vmatpush1.bf16.msra.mxu0 %v253
    %582 = vmatprep.subr.bf16.mxu0 0
    %583 = vmatpush1.bf16.msra.mxu0 %v254
    %584 = vmatprep.subr.bf16.mxu0 0
    %585 = vmatpush1.bf16.msra.mxu0 0
    %586 = vmatprep.subr.bf16.mxu0 0
    %587 = vmatpush1.bf16.msra.mxu0 0
    %588 = vmatprep.subr.bf16.mxu0 0
    %589 = vmatpush1.bf16.msra.mxu0 0
    %590 = vmatprep.subr.bf16.mxu0 0
    %591 = vmatpush1.bf16.msra.mxu0 0
    %592 = vmatprep.subr.bf16.mxu0 0
    %593 = vmatpush1.bf16.msra.mxu0 0
    %594 = vmatprep.subr.bf16.mxu0 0
    %595 = vmatpush1.bf16.msra.mxu0 0
    %596 = vmatprep.subr.bf16.mxu0 0
    %597 = vmatpush1.bf16.msra.mxu0 0
    %598 = vmatprep.subr.bf16.mxu0 0
    %599 = vmatpush1.bf16.msra.mxu0 0
    %600 = vmatprep.subr.bf16.mxu0 0
    %601 = vmatpush1.bf16.msra.mxu0 0
    %602 = vmatprep.subr.bf16.mxu0 0
    %603 = vmatpush1.bf16.msra.mxu0 0
    %604 = vmatprep.subr.bf16.mxu0 0
    %605 = vmatpush1.bf16.msra.mxu0 0
    %606 = vmatprep.subr.bf16.mxu0 0
    %607 = vmatpush1.bf16.msra.mxu0 0
    %608 = vmatprep.mubr.bf16.mxu0 0
    %609 = vmatmul.mubr.bf16.gmra.mrb[0].mxu0 %v529
    %v610 = vpop.f32.mrb[0].mxu0
    %v611 = vadd.f32 %v290, %v610
    %v612 = vpop.f32.mrb[0].mxu0
    %v613 = vpop.f32.mrb[0].mxu0
    %v614 = vadd.f32 %v295, %v613
    %v615 = vpop.f32.mrb[0].mxu0
    %616 = vmatprep.mubr.bf16.mxu0 0
    %617 = vmatmul.mubr.bf16.gmra.mrb[0].mxu0 %v532
    %v618 = vpop.f32.mrb[0].mxu0
    %v619 = vadd.f32 %v300, %v618
    %v620 = vpop.f32.mrb[0].mxu0
    %v621 = vpop.f32.mrb[0].mxu0
    %v622 = vadd.f32 %v305, %v621
    %v623 = vpop.f32.mrb[0].mxu0
    %624 = vmatprep.mubr.bf16.mxu0 0
    %625 = vmatmul.mubr.bf16.gmra.mrb[0].mxu0 %v535
    %v626 = vpop.f32.mrb[0].mxu0
    %v627 = vadd.f32 %v310, %v626
    %v628 = vpop.f32.mrb[0].mxu0
    %v629 = vpop.f32.mrb[0].mxu0
    %v630 = vadd.f32 %v315, %v629
    %v631 = vpop.f32.mrb[0].mxu0
    %632 = vmatprep.mubr.bf16.mxu0 0
    %633 = vmatmul.mubr.bf16.gmra.mrb[0].mxu0 %v538
    %v634 = vpop.f32.mrb[0].mxu0
    %v635 = vadd.f32 %v320, %v634
    %v636 = vpop.f32.mrb[0].mxu0
    %v637 = vpop.f32.mrb[0].mxu0
    %v638 = vadd.f32 %v325, %v637
    %v639 = vpop.f32.mrb[0].mxu0
    %640 = vmatprep.mubr.bf16.mxu0 0
    %641 = vmatmul.mubr.bf16.gmra.mrb[0].mxu0 %v541
    %v642 = vpop.f32.mrb[0].mxu0
    %v643 = vadd.f32 %v330, %v642
    %v644 = vpop.f32.mrb[0].mxu0
    %v645 = vpop.f32.mrb[0].mxu0
    %v646 = vadd.f32 %v335, %v645
    %v647 = vpop.f32.mrb[0].mxu0
    %648 = vmatprep.mubr.bf16.mxu0 0
    %649 = vmatmul.mubr.bf16.gmra.mrb[0].mxu0 %v544
    %v650 = vpop.f32.mrb[0].mxu0
    %v651 = vadd.f32 %v340, %v650
    %v652 = vpop.f32.mrb[0].mxu0
    %v653 = vpop.f32.mrb[0].mxu0
    %v654 = vadd.f32 %v345, %v653
    %v655 = vpop.f32.mrb[0].mxu0
    %656 = vmatprep.mubr.bf16.mxu0 0
    %657 = vmatmul.mubr.bf16.gmra.mrb[0].mxu0 %v547
    %v658 = vpop.f32.mrb[0].mxu0
    %v659 = vadd.f32 %v350, %v658
    %v660 = vpop.f32.mrb[0].mxu0
    %v661 = vpop.f32.mrb[0].mxu0
    %v662 = vadd.f32 %v355, %v661
    %v663 = vpop.f32.mrb[0].mxu0
    %664 = vmatprep.mubr.bf16.mxu0 0
    %665 = vmatmul.mubr.bf16.gmra.mrb[0].mxu0 %v550
    %v666 = vpop.f32.mrb[0].mxu0
    %v667 = vadd.f32 %v360, %v666
    %v668 = vpop.f32.mrb[0].mxu0
    %v669 = vpop.f32.mrb[0].mxu0
    %v670 = vadd.f32 %v365, %v669
    %v671 = vpop.f32.mrb[0].mxu0
    %672 = vmatprep.mubr.bf16.mxu0 0
    %673 = vmatmul.mubr.bf16.gmra.mrb[0].mxu0 %v553
    %v674 = vpop.f32.mrb[0].mxu0
    %v675 = vadd.f32 %v370, %v674
    %v676 = vpop.f32.mrb[0].mxu0
    %v677 = vpop.f32.mrb[0].mxu0
    %v678 = vadd.f32 %v375, %v677
    %v679 = vpop.f32.mrb[0].mxu0
    %680 = vmatprep.mubr.bf16.mxu0 0
    %681 = vmatmul.mubr.bf16.gmra.mrb[0].mxu0 %v556
    %v682 = vpop.f32.mrb[0].mxu0
    %v683 = vadd.f32 %v380, %v682
    %v684 = vpop.f32.mrb[0].mxu0
    %v685 = vpop.f32.mrb[0].mxu0
    %v686 = vadd.f32 %v385, %v685
    %v687 = vpop.f32.mrb[0].mxu0
    %688 = vmatprep.mubr.bf16.mxu0 0
    %689 = vmatmul.mubr.bf16.gmra.mrb[0].mxu0 %v559
    %v690 = vpop.f32.mrb[0].mxu0
    %v691 = vadd.f32 %v390, %v690
    %v692 = vpop.f32.mrb[0].mxu0
    %v693 = vpop.f32.mrb[0].mxu0
    %v694 = vadd.f32 %v395, %v693
    %v695 = vpop.f32.mrb[0].mxu0
    %696 = vmatprep.mubr.bf16.mxu0 0
    %697 = vmatmul.mubr.bf16.gmra.mrb[0].mxu0 %v562
    %v698 = vpop.f32.mrb[0].mxu0
    %v699 = vadd.f32 %v400, %v698
    %v700 = vpop.f32.mrb[0].mxu0
    %v701 = vpop.f32.mrb[0].mxu0
    %v702 = vadd.f32 %v405, %v701
    %v703 = vpop.f32.mrb[0].mxu0
    %704 = vmatprep.mubr.bf16.mxu0 0
    %705 = vmatmul.mubr.bf16.gmra.mrb[0].mxu0 %v565
    %v706 = vpop.f32.mrb[0].mxu0
    %v707 = vadd.f32 %v410, %v706
    %v708 = vpop.f32.mrb[0].mxu0
    %v709 = vpop.f32.mrb[0].mxu0
    %v710 = vadd.f32 %v415, %v709
    %v711 = vpop.f32.mrb[0].mxu0
    %712 = vmatprep.mubr.bf16.mxu0 0
    %713 = vmatmul.mubr.bf16.gmra.mrb[0].mxu0 %v568
    %v714 = vpop.f32.mrb[0].mxu0
    %v715 = vadd.f32 %v420, %v714
    %v716 = vpop.f32.mrb[0].mxu0
    %v717 = vpop.f32.mrb[0].mxu0
    %v718 = vadd.f32 %v425, %v717
    %v719 = vpop.f32.mrb[0].mxu0
    %720 = vmatprep.mubr.bf16.mxu0 0
    %721 = vmatmul.mubr.bf16.gmra.mrb[0].mxu0 %v571
    %v722 = vpop.f32.mrb[0].mxu0
    %v723 = vadd.f32 %v430, %v722
    %v724 = vpop.f32.mrb[0].mxu0
    %v725 = vpop.f32.mrb[0].mxu0
    %v726 = vadd.f32 %v435, %v725
    %v727 = vpop.f32.mrb[0].mxu0
    %728 = vmatprep.mubr.bf16.mxu0 0
    %729 = vmatmul.mubr.bf16.gmra.mrb[0].mxu0 %v574
    %v730 = vpop.f32.mrb[0].mxu0
    %v731 = vadd.f32 %v440, %v730
    %v732 = vpop.f32.mrb[0].mxu0
    %v733 = vpop.f32.mrb[0].mxu0
    %v734 = vadd.f32 %v445, %v733
    %v735 = vpop.f32.mrb[0].mxu0
    %736 = vdwg.mxu0
    %vm737 = vcmp.gt.f32.partialorder %v611, 0.0
    %vm738 = vcmp.gt.f32.partialorder %v614, 0.0
    %vm739 = vcmp.gt.f32.partialorder %v619, 0.0
    %vm740 = vcmp.gt.f32.partialorder %v622, 0.0
    %vm741 = vcmp.gt.f32.partialorder %v627, 0.0
    %vm742 = vcmp.gt.f32.partialorder %v630, 0.0
    %vm743 = vcmp.gt.f32.partialorder %v635, 0.0
    %vm744 = vcmp.gt.f32.partialorder %v638, 0.0
    %vm745 = vcmp.gt.f32.partialorder %v643, 0.0
    %vm746 = vcmp.gt.f32.partialorder %v646, 0.0
    %vm747 = vcmp.gt.f32.partialorder %v651, 0.0
    %vm748 = vcmp.gt.f32.partialorder %v654, 0.0
    %vm749 = vcmp.gt.f32.partialorder %v659, 0.0
    %vm750 = vcmp.gt.f32.partialorder %v662, 0.0
    %vm751 = vcmp.gt.f32.partialorder %v667, 0.0
    %vm752 = vcmp.gt.f32.partialorder %v670, 0.0
    %vm753 = vcmp.gt.f32.partialorder %v675, 0.0
    %vm754 = vcmp.gt.f32.partialorder %v678, 0.0
    %vm755 = vcmp.gt.f32.partialorder %v683, 0.0
    %vm756 = vcmp.gt.f32.partialorder %v686, 0.0
    %vm757 = vcmp.gt.f32.partialorder %v691, 0.0
    %vm758 = vcmp.gt.f32.partialorder %v694, 0.0
    %vm759 = vcmp.gt.f32.partialorder %v699, 0.0
    %vm760 = vcmp.gt.f32.partialorder %v702, 0.0
    %vm761 = vcmp.gt.f32.partialorder %v707, 0.0
    %vm762 = vcmp.gt.f32.partialorder %v710, 0.0
    %vm763 = vcmp.gt.f32.partialorder %v715, 0.0
    %vm764 = vcmp.gt.f32.partialorder %v718, 0.0
    %vm765 = vcmp.gt.f32.partialorder %v723, 0.0
    %vm766 = vcmp.gt.f32.partialorder %v726, 0.0
    %vm767 = vcmp.gt.f32.partialorder %v731, 0.0
    %vm768 = vcmp.gt.f32.partialorder %v734, 0.0
    %v769 = vmul.f32 %v611, 0.2
    %v770 = vmul.f32 %v614, 0.2
    %v771 = vmul.f32 %v619, 0.2
    %v772 = vmul.f32 %v622, 0.2
    %v773 = vmul.f32 %v627, 0.2
    %v774 = vmul.f32 %v630, 0.2
    %v775 = vmul.f32 %v635, 0.2
    %v776 = vmul.f32 %v638, 0.2
    %v777 = vmul.f32 %v643, 0.2
    %v778 = vmul.f32 %v646, 0.2
    %v779 = vmul.f32 %v651, 0.2
    %v780 = vmul.f32 %v654, 0.2
    %v781 = vmul.f32 %v659, 0.2
    %v782 = vmul.f32 %v662, 0.2
    %v783 = vmul.f32 %v667, 0.2
    %v784 = vmul.f32 %v670, 0.2
    %v785 = vmul.f32 %v675, 0.2
    %v786 = vmul.f32 %v678, 0.2
    %v787 = vmul.f32 %v683, 0.2
    %v788 = vmul.f32 %v686, 0.2
    %v789 = vmul.f32 %v691, 0.2
    %v790 = vmul.f32 %v694, 0.2
    %v791 = vmul.f32 %v699, 0.2
    %v792 = vmul.f32 %v702, 0.2
    %v793 = vmul.f32 %v707, 0.2
    %v794 = vmul.f32 %v710, 0.2
    %v795 = vmul.f32 %v715, 0.2
    %v796 = vmul.f32 %v718, 0.2
    %v797 = vmul.f32 %v723, 0.2
    %v798 = vmul.f32 %v726, 0.2
    %v799 = vmul.f32 %v731, 0.2
    %v800 = vmul.f32 %v734, 0.2
    %v801 = vsel %vm737, %v611, %v769
    %v802 = vsel %vm738, %v614, %v770
    %v803 = vsel %vm739, %v619, %v771
    %v804 = vsel %vm740, %v622, %v772
    %v805 = vsel %vm741, %v627, %v773
    %v806 = vsel %vm742, %v630, %v774
    %v807 = vsel %vm743, %v635, %v775
    %v808 = vsel %vm744, %v638, %v776
    %v809 = vsel %vm745, %v643, %v777
    %v810 = vsel %vm746, %v646, %v778
    %v811 = vsel %vm747, %v651, %v779
    %v812 = vsel %vm748, %v654, %v780
    %v813 = vsel %vm749, %v659, %v781
    %v814 = vsel %vm750, %v662, %v782
    %v815 = vsel %vm751, %v667, %v783
    %v816 = vsel %vm752, %v670, %v784
    %v817 = vsel %vm753, %v675, %v785
    %v818 = vsel %vm754, %v678, %v786
    %v819 = vsel %vm755, %v683, %v787
    %v820 = vsel %vm756, %v686, %v788
    %v821 = vsel %vm757, %v691, %v789
    %v822 = vsel %vm758, %v694, %v790
    %v823 = vsel %vm759, %v699, %v791
    %v824 = vsel %vm760, %v702, %v792
    %v825 = vsel %vm761, %v707, %v793
    %v826 = vsel %vm762, %v710, %v794
    %v827 = vsel %vm763, %v715, %v795
    %v828 = vsel %vm764, %v718, %v796
    %v829 = vsel %vm765, %v723, %v797
    %v830 = vsel %vm766, %v726, %v798
    %v831 = vsel %vm767, %v731, %v799
    %v832 = vsel %vm768, %v734, %v800
    %v833 = vld [vmem:[%s5] sm:$0xff]
    %v834 = vld [vmem:[%s5 + $0x8] sm:$0xff]
    %v835 = vld [vmem:[%s5 + $0x10] sm:$0xff]
    %v836 = vld [vmem:[%s5 + $0x18] sm:$0xff]
    %v837 = vld [vmem:[%s5 + $0x20] sm:$0xff]
    %v838 = vld [vmem:[%s5 + $0x28] sm:$0xff]
    %v839 = vld [vmem:[%s5 + $0x30] sm:$0xff]
    %v840 = vld [vmem:[%s5 + $0x38] sm:$0xff]
    %v841 = vpack.c.bf16 %v802, %v801
    %v842 = vpack.c.bf16 %v804, %v803
    %v843 = vpack.c.bf16 %v806, %v805
    %v844 = vpack.c.bf16 %v808, %v807
    %v845 = vpack.c.bf16 %v810, %v809
    %v846 = vpack.c.bf16 %v812, %v811
    %v847 = vpack.c.bf16 %v814, %v813
    %v848 = vpack.c.bf16 %v816, %v815
    %v849 = vpack.c.bf16 %v818, %v817
    %v850 = vpack.c.bf16 %v820, %v819
    %v851 = vpack.c.bf16 %v822, %v821
    %v852 = vpack.c.bf16 %v824, %v823
    %v853 = vpack.c.bf16 %v826, %v825
    %v854 = vpack.c.bf16 %v828, %v827
    %v855 = vpack.c.bf16 %v830, %v829
    %v856 = vpack.c.bf16 %v832, %v831
    %v857 = vld [vmem:[%s6] sm:$0xff]
    %v858 = vld [vmem:[%s6 + $0x8] sm:$0xff]
    %v859 = vld [vmem:[%s6 + $0x10] sm:$0xff]
    %v860 = vld [vmem:[%s6 + $0x18] sm:$0xff]
    %v861 = vld [vmem:[%s6 + $0x20] sm:$0xff]
    %v862 = vld [vmem:[%s6 + $0x28] sm:$0xff]
    %v863 = vld [vmem:[%s6 + $0x30] sm:$0xff]
    %v864 = vld [vmem:[%s6 + $0x38] sm:$0xff]
    %866 = vset.pattern.permute.xlu0 0
    %867 = vperm.xlu0 %866, %v857
    %v868 = vpop.permute.xlu0 %867
    %871 = vset.pattern.permute.xlu0 0
    %872 = vperm.xlu0 %871, %v858
    %v873 = vpop.permute.xlu0 %872
    %876 = vset.pattern.permute.xlu0 0
    %877 = vperm.xlu0 %876, %v859
    %v878 = vpop.permute.xlu0 %877
    %881 = vset.pattern.permute.xlu0 0
    %882 = vperm.xlu0 %881, %v860
    %v883 = vpop.permute.xlu0 %882
    %886 = vset.pattern.permute.xlu0 0
    %887 = vperm.xlu0 %886, %v861
    %v888 = vpop.permute.xlu0 %887
    %891 = vset.pattern.permute.xlu0 0
    %892 = vperm.xlu0 %891, %v862
    %v893 = vpop.permute.xlu0 %892
    %896 = vset.pattern.permute.xlu0 0
    %897 = vperm.xlu0 %896, %v863
    %v898 = vpop.permute.xlu0 %897
    %901 = vset.pattern.permute.xlu0 0
    %902 = vperm.xlu0 %901, %v864
    %v903 = vpop.permute.xlu0 %902
    %v913 = vunpack.c.l.b16 %v833
    %v914 = vunpack.c.h.b16 %v833
    %v915 = vunpack.c.l.b16 %v834
    %v916 = vunpack.c.h.b16 %v834
    %v917 = vunpack.c.l.b16 %v835
    %v918 = vunpack.c.h.b16 %v835
    %v919 = vunpack.c.l.b16 %v836
    %v920 = vunpack.c.h.b16 %v836
    %v921 = vunpack.c.l.b16 %v837
    %v922 = vunpack.c.h.b16 %v837
    %v923 = vunpack.c.l.b16 %v838
    %v924 = vunpack.c.h.b16 %v838
    %v925 = vunpack.c.l.b16 %v839
    %v926 = vunpack.c.h.b16 %v839
    %v927 = vunpack.c.l.b16 %v840
    %v928 = vunpack.c.h.b16 %v840
    %v929 = vpack.c.b16 %v915, %v913
    %v930 = vpack.c.b16 %v916, %v914
    %v931 = vpack.c.b16 %v919, %v917
    %v932 = vpack.c.b16 %v920, %v918
    %v933 = vpack.c.b16 %v923, %v921
    %v934 = vpack.c.b16 %v924, %v922
    %v935 = vpack.c.b16 %v927, %v925
    %v936 = vpack.c.b16 %v928, %v926
    %945 = vmatprep.subr.bf16.mxu0 0
    %946 = vmatpush1.bf16.msra.mxu0 %v841
    %947 = vmatprep.subr.bf16.mxu0 0
    %948 = vmatpush1.bf16.msra.mxu0 %v842
    %949 = vmatprep.subr.bf16.mxu0 0
    %950 = vmatpush1.bf16.msra.mxu0 %v843
    %951 = vmatprep.subr.bf16.mxu0 0
    %952 = vmatpush1.bf16.msra.mxu0 %v844
    %953 = vmatprep.subr.bf16.mxu0 0
    %954 = vmatpush1.bf16.msra.mxu0 %v845
    %955 = vmatprep.subr.bf16.mxu0 0
    %956 = vmatpush1.bf16.msra.mxu0 %v846
    %957 = vmatprep.subr.bf16.mxu0 0
    %958 = vmatpush1.bf16.msra.mxu0 %v847
    %959 = vmatprep.subr.bf16.mxu0 0
    %960 = vmatpush1.bf16.msra.mxu0 %v848
    %961 = vmatprep.subr.bf16.mxu0 0
    %962 = vmatpush1.bf16.msra.mxu0 %v849
    %963 = vmatprep.subr.bf16.mxu0 0
    %964 = vmatpush1.bf16.msra.mxu0 %v850
    %965 = vmatprep.subr.bf16.mxu0 0
    %966 = vmatpush1.bf16.msra.mxu0 %v851
    %967 = vmatprep.subr.bf16.mxu0 0
    %968 = vmatpush1.bf16.msra.mxu0 %v852
    %969 = vmatprep.subr.bf16.mxu0 0
    %970 = vmatpush1.bf16.msra.mxu0 %v853
    %971 = vmatprep.subr.bf16.mxu0 0
    %972 = vmatpush1.bf16.msra.mxu0 %v854
    %973 = vmatprep.subr.bf16.mxu0 0
    %974 = vmatpush1.bf16.msra.mxu0 %v855
    %975 = vmatprep.subr.bf16.mxu0 0
    %976 = vmatpush1.bf16.msra.mxu0 %v856
    %977 = vmatprep.mubr.bf16.mxu0 %v930
    %978 = vmatmul.mubr.bf16.gmra.mrb[0].mxu0 %v929
    %v979 = vpop.f32.mrb[0].mxu0
    %v980 = vadd.f32 %v868, %v979
    %v981 = vpop.f32.mrb[0].mxu0
    %v982 = vpop.f32.mrb[0].mxu0
    %v983 = vadd.f32 %v873, %v982
    %v984 = vpop.f32.mrb[0].mxu0
    %985 = vmatprep.mubr.bf16.mxu0 %v932
    %986 = vmatmul.mubr.bf16.gmra.mrb[0].mxu0 %v931
    %v987 = vpop.f32.mrb[0].mxu0
    %v988 = vadd.f32 %v878, %v987
    %v989 = vpop.f32.mrb[0].mxu0
    %v990 = vpop.f32.mrb[0].mxu0
    %v991 = vadd.f32 %v883, %v990
    %v992 = vpop.f32.mrb[0].mxu0
    %993 = vmatprep.mubr.bf16.mxu0 %v934
    %994 = vmatmul.mubr.bf16.gmra.mrb[0].mxu0 %v933
    %v995 = vpop.f32.mrb[0].mxu0
    %v996 = vadd.f32 %v888, %v995
    %v997 = vpop.f32.mrb[0].mxu0
    %v998 = vpop.f32.mrb[0].mxu0
    %v999 = vadd.f32 %v893, %v998
    %v1000 = vpop.f32.mrb[0].mxu0
    %1001 = vmatprep.mubr.bf16.mxu0 %v936
    %1002 = vmatmul.mubr.bf16.gmra.mrb[0].mxu0 %v935
    %v1003 = vpop.f32.mrb[0].mxu0
    %v1004 = vadd.f32 %v898, %v1003
    %v1005 = vpop.f32.mrb[0].mxu0
    %v1006 = vpop.f32.mrb[0].mxu0
    %v1007 = vadd.f32 %v903, %v1006
    %v1008 = vpop.f32.mrb[0].mxu0
    %1009 = vdwg.mxu0
    %vm1010 = vcmp.gt.f32.partialorder %v980, 0.0
    %vm1011 = vcmp.gt.f32.partialorder %v983, 0.0
    %vm1012 = vcmp.gt.f32.partialorder %v988, 0.0
    %vm1013 = vcmp.gt.f32.partialorder %v991, 0.0
    %vm1014 = vcmp.gt.f32.partialorder %v996, 0.0
    %vm1015 = vcmp.gt.f32.partialorder %v999, 0.0
    %vm1016 = vcmp.gt.f32.partialorder %v1004, 0.0
    %vm1017 = vcmp.gt.f32.partialorder %v1007, 0.0
    %v1018 = vmul.f32 %v980, 0.2
    %v1019 = vmul.f32 %v983, 0.2
    %v1020 = vmul.f32 %v988, 0.2
    %v1021 = vmul.f32 %v991, 0.2
    %v1022 = vmul.f32 %v996, 0.2
    %v1023 = vmul.f32 %v999, 0.2
    %v1024 = vmul.f32 %v1004, 0.2
    %v1025 = vmul.f32 %v1007, 0.2
    %v1026 = vsel %vm1010, %v980, %v1018
    %v1027 = vsel %vm1011, %v983, %v1019
    %v1028 = vsel %vm1012, %v988, %v1020
    %v1029 = vsel %vm1013, %v991, %v1021
    %v1030 = vsel %vm1014, %v996, %v1022
    %v1031 = vsel %vm1015, %v999, %v1023
    %v1032 = vsel %vm1016, %v1004, %v1024
    %v1033 = vsel %vm1017, %v1007, %v1025
    %v1034 = vld [vmem:[%s7] sm:$0xff]
    %v1035 = vld [vmem:[%s7 + $0x8] sm:$0xff]
    %v1036 = vld [vmem:[%s7 + $0x10] sm:$0xff]
    %v1037 = vld [vmem:[%s7 + $0x18] sm:$0xff]
    %v1038 = vld [vmem:[%s7 + $0x20] sm:$0xff]
    %v1039 = vld [vmem:[%s7 + $0x28] sm:$0xff]
    %v1040 = vld [vmem:[%s7 + $0x30] sm:$0xff]
    %v1041 = vld [vmem:[%s7 + $0x38] sm:$0xff]
    %1043 = vset.pattern.permute.xlu0 0
    %1044 = vperm.xlu0 %1043, %v1034
    %v1045 = vpop.permute.xlu0 %1044
    %1048 = vset.pattern.permute.xlu0 0
    %1049 = vperm.xlu0 %1048, %v1035
    %v1050 = vpop.permute.xlu0 %1049
    %1053 = vset.pattern.permute.xlu0 0
    %1054 = vperm.xlu0 %1053, %v1036
    %v1055 = vpop.permute.xlu0 %1054
    %1058 = vset.pattern.permute.xlu0 0
    %1059 = vperm.xlu0 %1058, %v1037
    %v1060 = vpop.permute.xlu0 %1059
    %1063 = vset.pattern.permute.xlu0 0
    %1064 = vperm.xlu0 %1063, %v1038
    %v1065 = vpop.permute.xlu0 %1064
    %1068 = vset.pattern.permute.xlu0 0
    %1069 = vperm.xlu0 %1068, %v1039
    %v1070 = vpop.permute.xlu0 %1069
    %1073 = vset.pattern.permute.xlu0 0
    %1074 = vperm.xlu0 %1073, %v1040
    %v1075 = vpop.permute.xlu0 %1074
    %1078 = vset.pattern.permute.xlu0 0
    %1079 = vperm.xlu0 %1078, %v1041
    %v1080 = vpop.permute.xlu0 %1079
    %v1082 = vmul.f32 %v1026, %v1045
    %v1083 = vmul.f32 %v1027, %v1050
    %v1084 = vmul.f32 %v1028, %v1055
    %v1085 = vmul.f32 %v1029, %v1060
    %v1086 = vmul.f32 %v1030, %v1065
    %v1087 = vmul.f32 %v1031, %v1070
    %v1088 = vmul.f32 %v1032, %v1075
    %v1089 = vmul.f32 %v1033, %v1080
    %v1090 = vadd.f32 %v1082, %v1083
    %v1091 = vadd.f32 %v1090, %v1084
    %v1092 = vadd.f32 %v1091, %v1085
    %v1093 = vadd.f32 %v1092, %v1086
    %v1094 = vadd.f32 %v1093, %v1087
    %v1095 = vadd.f32 %v1094, %v1088
    %v1096 = vadd.f32 %v1095, %v1089
    %v1097 = vrot.slane %v1096, 4
    %v1098 = vadd.f32 %v1096, %v1097
    %v1099 = vrot.slane %v1098, 2
    %v1100 = vadd.f32 %v1098, %v1099
    %v1101 = vrot.slane %v1100, 1
    %v1102 = vadd.f32 %v1100, %v1101
    %v1103 = vld [vmem:[#allocation2] sm:$0x1]
    %1105 = vset.pattern.permute.xlu0 0
    %1106 = vperm.xlu0 %1105, %v1103
    %v1107 = vpop.permute.xlu0 %1106
    %v1109 = vlaneseq
    %v1110 = vshrl.u32 %v1109, 7
    %v1111 = vsub.s32 0, %v1110
    %v1112 = vrot.slane %v1107, %v1111
    %v1113 = vadd.f32 %v1102, %v1112
    %v1114 = vsub.f32 0.0, %v1113
    %v1115 = vmul.f32 %v1114, 1.442695
    %v1116 = vpow.pop %v1115
    %v1117 = vadd.f32 %v1116, 1.0
    %v1118 = vrcp.pop %v1117
    %1119 = vst [vmem:[#allocation3] sm:$0x1] %v1118
    // Predicated region
    $region38: #{tpu_custom_call.1} parent=1 // pred_check
      _
    $region39: #{tpu_custom_call.1} parent=1 // pred_check_branch
      %1121 = sbr.rel (0) target = $region41
    $region40: #{tpu_custom_call.1} parent=1 // pred_region
      %s1123 = ssub.s32 16, 16
      %1124 = vsyncadd [#allocation4], %s1123
      %s1126 = sshll.u32 [#allocation3], 4
      %s1127 = int_to_ptr.vmem [resolvable:$true] %s1126
      %1129 = dma.vmem_to_hbm [thread:$0]  %s1127, 16, %s9, [#allocation4]
    $region41: #{tpu_custom_call.1} parent=1 // pred_fallthru
      _
    // Predicated region
    $region42: #{tpu_custom_call.1} parent=1 // pred_check
      _
    $region43: #{tpu_custom_call.1} parent=1 // pred_check_branch
      %1131 = sbr.rel (0) target = $region45
    $region44: #{tpu_custom_call.1} parent=1 // pred_region
      %1132 = dma.done [#allocation4], 16
    $region45: #{tpu_custom_call.1} parent=1 // pred_fallthru
      _
    %1133 = vsyncpa [#allocation4], 1

</llo_original>
